<compile_context>
chip_gen: v7x
topology: tpu7x:2x2x1
jax: 0.10.0
libtpu: 0.0.40
codegen_flags: <defaults>
</compile_context>

<pallas_src>
import functools

import jax
import jax.numpy as jnp
from jax.experimental import pallas as pl
from jax.experimental.pallas import tpu as pltpu


def _round_up(x, m):
    return ((x + m - 1) // m) * m


def _toppush_kernel(fps_ref, fns_ref, up_ref,
                    loss_rows_ref, up_new_ref,
                    acc_loss_ref, acc_cnt_ref,
                    *, margin, eta, pos_length, beta_num_neg, pad_cols):
    k = pl.program_id(1)

    @pl.when(k == 0)
    def _():
        acc_loss_ref[...] = jnp.zeros_like(acc_loss_ref)
        acc_cnt_ref[...] = jnp.zeros_like(acc_cnt_ref)

    u_p = up_ref[...]                                 # (tp, 1)
    a = margin - fps_ref[...]                         # (tp, 1)  hoisted once per row tile
    tn = fns_ref.shape[1]

    # VPU-only accumulation over static 128-lane slices.  Everything stays fused
    # vreg-by-vreg: no full (tile_p, tile_n) materialization, no MXU, no store-slot
    # pressure.  ~8 VPU ops per element total.
    for j in range(tn // 128):
        f_ns_j = fns_ref[:, j * 128:(j + 1) * 128]    # (1, 128)
        hinge = jnp.maximum(a + f_ns_j, 0.0)          # (tp, 128) = max(margin-(f_ps-f_ns),0)
        surr = hinge * hinge                          # squared hinge
        sel = surr > u_p                              # CVaR threshold (strict '>')
        acc_loss_ref[...] += jnp.where(sel, surr, 0.0)   # p * L
        acc_cnt_ref[...] += jnp.where(sel, 1.0, 0.0)     # p

    @pl.when(k == pl.num_programs(1) - 1)
    def _():
        row_loss = jnp.sum(acc_loss_ref[...], axis=-1, keepdims=True)   # (tp, 1)
        row_cnt = jnp.sum(acc_cnt_ref[...], axis=-1, keepdims=True)     # (tp, 1)
        # Padded f_ns lanes hold -1e30 -> surr == 0, contributing nothing to the
        # loss; strict '>' selects them only when u_p < 0, so subtract exactly
        # that many from the count (exact correction, no per-element mask needed).
        if pad_cols:
            row_cnt = row_cnt - jnp.where(u_p < 0.0, float(pad_cols), 0.0)
        loss_rows_ref[...] = row_loss
        up_new_ref[...] = u_p - (eta / pos_length) * (1.0 - row_cnt / beta_num_neg)


def toppush_loss(y_pred, y_true, index_p, u_pos, *, num_neg, pos_length,
                 n_pos, n_neg, margin=1.0, eta=1.0, tile_p=None, tile_n=None):
    """Returns (loss_scalar, u_pos_updated)."""
    beta = 1.0 / num_neg

    y_pred = jnp.reshape(y_pred, (-1,)).astype(jnp.float32)
    y_true = jnp.reshape(y_true, (-1,))
    index_p = jnp.reshape(index_p, (-1,))

    # glue: extract positives / negatives with STATIC counts.
    # TODO(synk): jnp.nonzero(..., size=) silently pads with index 0 if runtime
    # positive/negative counts differ from n_pos/n_neg -- caller must pass exact counts.
    pos_idx = jnp.nonzero(y_true == 1, size=n_pos)[0]
    neg_idx = jnp.nonzero(y_true == 0, size=n_neg)[0]
    valid_pos = jnp.nonzero(index_p >= 0, size=n_pos)[0]
    idx_p = index_p[valid_pos]                        # (n_pos,) indices into u_pos

    # tile sizes: lane-aligned (x128) negative tiles, sublane-aligned rows.
    # tile_n default is large to amortize the ~0.35us grid-step overhead (per-step DMA
    # of the f_ns block is only a few KiB).  tile_p default keeps >= 2 row tiles when
    # possible so the "parallel" axis can feed both v7x TensorCores.
    if tile_n is None:
        tile_n = min(2048, _round_up(n_neg, 128))
    if tile_p is None:
        base = _round_up(n_pos, 8)
        if base <= 512:
            tile_p = max(8, _round_up((base + 1) // 2, 8))
        else:
            tile_p = 256
    assert tile_p % 8 == 0 and tile_n % 128 == 0, "tile_p must be x8, tile_n x128"

    n_pos_pad = _round_up(n_pos, tile_p)
    n_neg_pad = _round_up(n_neg, tile_n)
    pad_cols = n_neg_pad - n_neg

    f_ps = jnp.zeros((n_pos_pad, 1), jnp.float32).at[:n_pos, 0].set(y_pred[pos_idx])
    # padded negative lanes get -1e30 -> hinge = 0 -> surr = 0 (see finalize correction)
    f_ns = jnp.full((1, n_neg_pad), -1e30, jnp.float32).at[0, :n_neg].set(y_pred[neg_idx])
    u_p = jnp.zeros((n_pos_pad, 1), jnp.float32).at[:n_pos, 0].set(
        u_pos[idx_p, 0].astype(jnp.float32))

    grid = (n_pos_pad // tile_p, n_neg_pad // tile_n)

    kernel = functools.partial(
        _toppush_kernel,
        margin=float(margin), eta=float(eta),
        pos_length=float(pos_length), beta_num_neg=float(beta * num_neg),
        pad_cols=int(pad_cols))

    cost = pl.CostEstimate(
        flops=int(8 * n_pos_pad * n_neg_pad),          # ~8 VPU ops / element, no MXU
        transcendentals=0,
        bytes_accessed=int(4 * (2 * n_pos_pad          # f_ps, u_p in
                                + n_neg_pad            # f_ns in
                                + 2 * n_pos_pad)),     # two outputs, counted once
    )

    loss_rows, u_p_new = pl.pallas_call(
        kernel,
        out_shape=(
            jax.ShapeDtypeStruct((n_pos_pad, 1), jnp.float32),   # per-positive sum(p*L)
            jax.ShapeDtypeStruct((n_pos_pad, 1), jnp.float32),   # updated u_pos[index_p]
        ),
        grid_spec=pltpu.PrefetchScalarGridSpec(
            num_scalar_prefetch=0,
            grid=grid,
            in_specs=[
                pl.BlockSpec((tile_p, 1), lambda i, k: (i, 0)),   # f_ps   (rows)
                pl.BlockSpec((1, tile_n), lambda i, k: (0, k)),   # f_ns   (lanes)
                pl.BlockSpec((tile_p, 1), lambda i, k: (i, 0)),   # u_pos[index_p] gathered
            ],
            out_specs=(
                pl.BlockSpec((tile_p, 1), lambda i, k: (i, 0)),
                pl.BlockSpec((tile_p, 1), lambda i, k: (i, 0)),
            ),
            scratch_shapes=[
                pltpu.VMEM((tile_p, 128), jnp.float32),   # masked-loss lane-group accumulator
                pltpu.VMEM((tile_p, 128), jnp.float32),   # selected-count lane-group accumulator
            ],
        ),
        compiler_params=pltpu.CompilerParams(
            dimension_semantics=("parallel", "arbitrary"),
            vmem_limit_bytes=32 * 1024 * 1024,
        ),
        cost_estimate=cost,
    )(f_ps, f_ns, u_p)

    loss = (jnp.sum(loss_rows[:n_pos]) / (n_pos * n_neg)) / beta   # mean(p*L) / beta
    # TODO(synk): the scatter of the dual update back into u_pos stays in XLA; an
    # in-kernel Element-indexed scatter with input_output_aliases would need per-row
    # output blocks and is not worth it at these sizes.
    u_pos_new = u_pos.at[idx_p].set(u_p_new[:n_pos])
    return loss, u_pos_new


def _reference(y_pred, y_true, index_p, u_pos, *, num_neg, pos_length,
               margin=1.0, eta=1.0):
    """Pure-JAX reference mirroring the torch forward (eager, boolean indexing)."""
    beta = 1.0 / num_neg
    y_pred = jnp.reshape(y_pred, (-1,)).astype(jnp.float32)
    y_true = jnp.reshape(y_true, (-1,))
    f_ps = y_pred[y_true == 1].reshape(-1, 1)
    f_ns = y_pred[y_true == 0].reshape(1, -1)
    idx_p = index_p[index_p >= 0]
    surr = jnp.maximum(margin - (f_ps - f_ns), 0.0) ** 2
    p = (surr > u_pos[idx_p]).astype(jnp.float32)
    u_new = u_pos.at[idx_p].set(
        u_pos[idx_p] - eta / pos_length * (1.0 - p.sum(1, keepdims=True) / (beta * num_neg)))
    loss = jnp.mean(p * surr) / beta
    return loss, u_new


if __name__ == "__main__":
    # small deterministic problem chosen to exercise padding + a 2x2 grid:
    # 12 positives (pads 12 -> 16 rows) and 200 negatives (pads 200 -> 256 lanes).
    N_POS, N_NEG = 12, 200
    TOTAL = N_POS + N_NEG
    POS_LENGTH = N_POS          # number of positives in the (synthetic) dataset
    NUM_NEG = N_NEG             # negatives per mini-batch -> beta = 1/num_neg

    key = jax.random.PRNGKey(0)
    k1, k2 = jax.random.split(key)

    y_pred = jax.random.normal(k1, (TOTAL, 1), dtype=jnp.float32)

    # deterministic label pattern: positives scattered through the batch
    perm = jax.random.permutation(k2, TOTAL)
    pos_positions = jnp.sort(perm[:N_POS])
    y_true = jnp.zeros((TOTAL,), dtype=jnp.int32).at[pos_positions].set(1)

    # index_p: for positive items, their index into u_pos (0..pos_length-1); -1 for negatives
    index_p = jnp.full((TOTAL,), -1, dtype=jnp.int32)
    index_p = index_p.at[pos_positions].set(jnp.arange(N_POS, dtype=jnp.int32))

    # dual variables u_pos; positive / zero / NEGATIVE entries exercise the threshold
    # both ways and the padded-lane count correction (u < 0 path).
    u_pos = jnp.zeros((POS_LENGTH, 1), dtype=jnp.float32)
    u_pos = u_pos.at[: N_POS // 2].set(0.25)
    u_pos = u_pos.at[N_POS // 2: 3 * N_POS // 4].set(-0.1)

    loss, u_pos_new = toppush_loss(
        y_pred, y_true, index_p, u_pos,
        num_neg=NUM_NEG, pos_length=POS_LENGTH,
        n_pos=N_POS, n_neg=N_NEG, margin=1.0, eta=1.0,
        tile_p=8, tile_n=128)    # small tiles -> grid (2, 2) with padded rows/cols
    loss = jax.block_until_ready(loss)
    u_pos_new = jax.block_until_ready(u_pos_new)

    loss_ref, u_ref = _reference(
        y_pred, y_true, index_p, u_pos,
        num_neg=NUM_NEG, pos_length=POS_LENGTH, margin=1.0, eta=1.0)

    assert jnp.allclose(loss, loss_ref, rtol=1e-5, atol=1e-5), (loss, loss_ref)
    assert jnp.allclose(u_pos_new, u_ref, rtol=1e-5, atol=1e-5)

    # second run with default (large) tiles to exercise the production path
    loss2, u_pos_new2 = toppush_loss(
        y_pred, y_true, index_p, u_pos,
        num_neg=NUM_NEG, pos_length=POS_LENGTH,
        n_pos=N_POS, n_neg=N_NEG, margin=1.0, eta=1.0)
    loss2 = jax.block_until_ready(loss2)
    assert jnp.allclose(loss2, loss_ref, rtol=1e-5, atol=1e-5), (loss2, loss_ref)
    assert jnp.allclose(u_pos_new2, u_ref, rtol=1e-5, atol=1e-5)

    print("KERNEL_OK")
</pallas_src>

<mosaic_0001>
module attributes {stable_mosaic.version = 11 : i64} {
  func.func @_toppush_kernel(%arg0: i32, %arg1: i32, %arg2: memref<8x1xf32, #tpu.memory_space<vmem>>, %arg3: memref<1x128xf32, #tpu.memory_space<vmem>>, %arg4: memref<8x1xf32, #tpu.memory_space<vmem>>, %arg5: memref<8x1xf32, #tpu.memory_space<vmem>>, %arg6: memref<8x1xf32, #tpu.memory_space<vmem>>, %arg7: memref<8x128xf32, #tpu.memory_space<vmem>>, %arg8: memref<8x128xf32, #tpu.memory_space<vmem>>) attributes {dimension_semantics = [#tpu.dimension_semantics<parallel>, #tpu.dimension_semantics<arbitrary>], iteration_bounds = array<i64: 2, 2>, scalar_prefetch = 0 : i64, scratch_operands = 2 : i64, tpu.core_type = #tpu.core_type<tc>, window_params = [{transform_indices = @transform_0, window_bounds = array<i64: 8, 1>}, {transform_indices = @transform_1, window_bounds = array<i64: 1, 128>}, {transform_indices = @transform_2, window_bounds = array<i64: 8, 1>}, {transform_indices = @transform_3, window_bounds = array<i64: 8, 1>}, {transform_indices = @transform_4, window_bounds = array<i64: 8, 1>}]} {
    %c0_i32 = arith.constant 0 : i32
    %0 = arith.cmpi eq, %arg1, %c0_i32 : i32
    %1 = arith.extui %0 : i1 to i32
    %c0_i32_0 = arith.constant 0 : i32
    %2 = arith.cmpi ne, %1, %c0_i32_0 : i32
    scf.if %2 {
      %cst_19 = arith.constant 0.000000e+00 : f32
      %30 = vector.broadcast %cst_19 : f32 to vector<8x128xf32>
      %c0_20 = arith.constant 0 : index
      %c0_21 = arith.constant 0 : index
      %31 = vector.load %arg7[%c0_20, %c0_21] : memref<8x128xf32, #tpu.memory_space<vmem>>, vector<8x128xf32>
      tpu.vector_store %arg7[%c0_20, %c0_21], %30 {strides = array<i32>} : memref<8x128xf32, #tpu.memory_space<vmem>>, vector<8x128xf32>,
      %cst_22 = arith.constant 0.000000e+00 : f32
      %32 = vector.broadcast %cst_22 : f32 to vector<8x128xf32>
      %c0_23 = arith.constant 0 : index
      %c0_24 = arith.constant 0 : index
      %33 = vector.load %arg8[%c0_23, %c0_24] : memref<8x128xf32, #tpu.memory_space<vmem>>, vector<8x128xf32>
      tpu.vector_store %arg8[%c0_23, %c0_24], %32 {strides = array<i32>} : memref<8x128xf32, #tpu.memory_space<vmem>>, vector<8x128xf32>,
    } else {
    }
    %c0 = arith.constant 0 : index
    %c0_1 = arith.constant 0 : index
    %3 = vector.load %arg4[%c0, %c0_1] : memref<8x1xf32, #tpu.memory_space<vmem>>, vector<8x1xf32>
    %c0_2 = arith.constant 0 : index
    %c0_3 = arith.constant 0 : index
    %4 = vector.load %arg2[%c0_2, %c0_3] : memref<8x1xf32, #tpu.memory_space<vmem>>, vector<8x1xf32>
    %cst = arith.constant 1.000000e+00 : f32
    %5 = vector.broadcast %cst : f32 to vector<8x1xf32>
    %6 = arith.subf %5, %4 : vector<8x1xf32>
    %c0_4 = arith.constant 0 : index
    %c0_5 = arith.constant 0 : index
    %7 = vector.load %arg3[%c0_4, %c0_5] : memref<1x128xf32, #tpu.memory_space<vmem>>, vector<1x128xf32>
    %8 = vector.broadcast %6 : vector<8x1xf32> to vector<8x128xf32>
    %9 = vector.broadcast %7 : vector<1x128xf32> to vector<8x128xf32>
    %10 = arith.addf %8, %9 : vector<8x128xf32>
    %cst_6 = arith.constant 0.000000e+00 : f32
    %11 = vector.broadcast %cst_6 : f32 to vector<8x128xf32>
    %12 = arith.maximumf %10, %11 : vector<8x128xf32>
    %13 = arith.mulf %12, %12 : vector<8x128xf32>
    %14 = vector.broadcast %3 : vector<8x1xf32> to vector<8x128xf32>
    %15 = arith.cmpf ogt, %13, %14 : vector<8x128xf32>
    %c0_7 = arith.constant 0 : index
    %c0_8 = arith.constant 0 : index
    %16 = vector.load %arg7[%c0_7, %c0_8] : memref<8x128xf32, #tpu.memory_space<vmem>>, vector<8x128xf32>
    %cst_9 = arith.constant 0.000000e+00 : f32
    %17 = vector.broadcast %cst_9 : f32 to vector<8x128xf32>
    %18 = arith.select %15, %13, %17 : vector<8x128xi1>, vector<8x128xf32>
    %19 = arith.addf %16, %18 : vector<8x128xf32>
    %c0_10 = arith.constant 0 : index
    %c0_11 = arith.constant 0 : index
    %20 = vector.load %arg7[%c0_10, %c0_11] : memref<8x128xf32, #tpu.memory_space<vmem>>, vector<8x128xf32>
    tpu.vector_store %arg7[%c0_10, %c0_11], %19 {strides = array<i32>} : memref<8x128xf32, #tpu.memory_space<vmem>>, vector<8x128xf32>,
    %c0_12 = arith.constant 0 : index
    %c0_13 = arith.constant 0 : index
    %21 = vector.load %arg8[%c0_12, %c0_13] : memref<8x128xf32, #tpu.memory_space<vmem>>, vector<8x128xf32>
    %cst_14 = arith.constant 1.000000e+00 : f32
    %cst_15 = arith.constant 0.000000e+00 : f32
    %22 = vector.broadcast %cst_14 : f32 to vector<8x128xf32>
    %23 = vector.broadcast %cst_15 : f32 to vector<8x128xf32>
    %24 = arith.select %15, %22, %23 : vector<8x128xi1>, vector<8x128xf32>
    %25 = arith.addf %21, %24 : vector<8x128xf32>
    %c0_16 = arith.constant 0 : index
    %c0_17 = arith.constant 0 : index
    %26 = vector.load %arg8[%c0_16, %c0_17] : memref<8x128xf32, #tpu.memory_space<vmem>>, vector<8x128xf32>
    tpu.vector_store %arg8[%c0_16, %c0_17], %25 {strides = array<i32>} : memref<8x128xf32, #tpu.memory_space<vmem>>, vector<8x128xf32>,
    %c1_i32 = arith.constant 1 : i32
    %27 = arith.cmpi eq, %arg1, %c1_i32 : i32
    %28 = arith.extui %27 : i1 to i32
    %c0_i32_18 = arith.constant 0 : i32
    %29 = arith.cmpi ne, %28, %c0_i32_18 : i32
    scf.if %29 {
      %c0_19 = arith.constant 0 : index
      %c0_20 = arith.constant 0 : index
      %30 = vector.load %arg7[%c0_19, %c0_20] : memref<8x128xf32, #tpu.memory_space<vmem>>, vector<8x128xf32>
      %cst_21 = arith.constant dense<0.000000e+00> : vector<8xf32>
      %31 = vector.multi_reduction <add>, %30, %cst_21 [1] : vector<8x128xf32> to vector<8xf32>
      %32 = vector.shape_cast %31 : vector<8xf32> to vector<8x1xf32>
      %c0_22 = arith.constant 0 : index
      %c0_23 = arith.constant 0 : index
      %33 = vector.load %arg8[%c0_22, %c0_23] : memref<8x128xf32, #tpu.memory_space<vmem>>, vector<8x128xf32>
      %cst_24 = arith.constant dense<0.000000e+00> : vector<8xf32>
      %34 = vector.multi_reduction <add>, %33, %cst_24 [1] : vector<8x128xf32> to vector<8xf32>
      %35 = vector.shape_cast %34 : vector<8xf32> to vector<8x1xf32>
      %cst_25 = arith.constant 0.000000e+00 : f32
      %36 = vector.broadcast %cst_25 : f32 to vector<8x1xf32>
      %37 = arith.cmpf olt, %3, %36 : vector<8x1xf32>
      %cst_26 = arith.constant 5.600000e+01 : f32
      %cst_27 = arith.constant 0.000000e+00 : f32
      %38 = vector.broadcast %cst_26 : f32 to vector<8x1xf32>
      %39 = vector.broadcast %cst_27 : f32 to vector<8x1xf32>
      %40 = arith.select %37, %38, %39 : vector<8x1xi1>, vector<8x1xf32>
      %41 = arith.subf %35, %40 : vector<8x1xf32>
      %c0_28 = arith.constant 0 : index
      %c0_29 = arith.constant 0 : index
      %42 = vector.load %arg5[%c0_28, %c0_29] : memref<8x1xf32, #tpu.memory_space<vmem>>, vector<8x1xf32>
      tpu.vector_store %arg5[%c0_28, %c0_29], %32 {strides = array<i32>} : memref<8x1xf32, #tpu.memory_space<vmem>>, vector<8x1xf32>,
      %cst_30 = arith.constant 1.000000e+00 : f32
      %43 = vector.broadcast %cst_30 : f32 to vector<8x1xf32>
      %44 = arith.divf %41, %43 : vector<8x1xf32>
      %cst_31 = arith.constant 1.000000e+00 : f32
      %45 = vector.broadcast %cst_31 : f32 to vector<8x1xf32>
      %46 = arith.subf %45, %44 : vector<8x1xf32>
      %cst_32 = arith.constant 0.0833333358 : f32
      %47 = vector.broadcast %cst_32 : f32 to vector<8x1xf32>
      %48 = arith.mulf %47, %46 : vector<8x1xf32>
      %49 = arith.subf %3, %48 : vector<8x1xf32>
      %c0_33 = arith.constant 0 : index
      %c0_34 = arith.constant 0 : index
      %50 = vector.load %arg6[%c0_33, %c0_34] : memref<8x1xf32, #tpu.memory_space<vmem>>, vector<8x1xf32>
      tpu.vector_store %arg6[%c0_33, %c0_34], %49 {strides = array<i32>} : memref<8x1xf32, #tpu.memory_space<vmem>>, vector<8x1xf32>,
    } else {
    }
    return
  }
  func.func @transform_0(%arg0: i32, %arg1: i32) -> (i32, i32) {
    %c0_i32 = arith.constant 0 : i32
    %c0_i32_0 = arith.constant 0 : i32
    return %arg0, %c0_i32 : i32, i32
  }
  func.func @transform_1(%arg0: i32, %arg1: i32) -> (i32, i32) {
    %c0_i32 = arith.constant 0 : i32
    %c0_i32_0 = arith.constant 0 : i32
    return %c0_i32, %arg1 : i32, i32
  }
  func.func @transform_2(%arg0: i32, %arg1: i32) -> (i32, i32) {
    %c0_i32 = arith.constant 0 : i32
    %c0_i32_0 = arith.constant 0 : i32
    return %arg0, %c0_i32 : i32, i32
  }
  func.func @transform_3(%arg0: i32, %arg1: i32) -> (i32, i32) {
    %c0_i32 = arith.constant 0 : i32
    %c0_i32_0 = arith.constant 0 : i32
    return %arg0, %c0_i32 : i32, i32
  }
  func.func @transform_4(%arg0: i32, %arg1: i32) -> (i32, i32) {
    %c0_i32 = arith.constant 0 : i32
    %c0_i32_0 = arith.constant 0 : i32
    return %arg0, %c0_i32 : i32, i32
  }
}

</mosaic_0001>

<llo_original>
// kernel: tpu_custom_call.1
$region0: #{tpu_custom_call.1}
  #allocation0 [shape = 'u32[]', space=smem, size = 0x4, offset = 0x4, fixed_abs, tag = 'smem constant byte address 0x4 - core index']
  #allocation1 [shape = 'u32[144,128]{1,0:T(1,128)}', space=vmem, size = 0x12000, scoped, tag = 'internal scratch']
  #allocation2 [shape = 'f32[8,128]{1,0:T(8,128)}', space=vmem, size = 0x1000, scoped, tag = 'scratch operand']
  #allocation3 [shape = 'f32[8,128]{1,0:T(8,128)}', space=vmem, size = 0x1000, scoped, tag = 'scratch operand']
  %s0 = inlined_call_operand.vmem [shape: f32[16,1], index: 0, kind: input, shape index: {}]
  %s1 = inlined_call_operand.vmem [shape: f32[1,256], index: 1, kind: input, shape index: {}]
  %s2 = inlined_call_operand.vmem [shape: f32[16,1], index: 2, kind: input, shape index: {}]
  %s3 = inlined_call_operand.vmem [shape: f32[16,1], index: 3, kind: output, shape index: {0}]
  %s4 = inlined_call_operand.vmem [shape: f32[16,1], index: 4, kind: output, shape index: {1}]
  %5 = xla_tuple %s3, %s4
  %s6 = sld [smem:[#allocation0]]
  $region61: #{tpu_custom_call.1} parent=0
    _
  %s8 = ssub.s32 1, %s6
  %s9 = scalar_select 0, %s8, %s6
  loop: start=0, step=1, limit=6
  $region2: #{tpu_custom_call.1} parent=0 // loop_pre_header
    _
  $region3: #{tpu_custom_call.1} parent=0 // loop_header
    %s11 = sphi 0, %s15
    %p12 = scmp.ge.s32.totalorder %s11, 6
    %s18 = sphi 0, %s30
    %s19 = sphi 0, %s26
    %s20 = sphi 0, %s18
    %s21 = sphi 0, %s19
    %s22 = sphi 0, %s20
    %s23 = sphi 0, %s21
    %s33 = sphi 0, %s35
    %s36 = sphi 0, %s33
    %s37 = sphi 0, %s36
    %s53 = sphi 0, %s37
    %s59 = sphi 0, %s61
    %s62 = sphi 0, %s59
    %s63 = sphi 0, %s62
    %s79 = sphi 0, %s63
    %s85 = sphi 0, %s87
    %s88 = sphi 0, %s85
    %s89 = sphi 0, %s88
    %s105 = sphi 0, %s89
    %s111 = sphi 0, %s113
    %s114 = sphi 0, %s111
    %s115 = sphi 0, %s114
    %s131 = sphi 0, %s115
    %s137 = sphi 0, %s139
    %s140 = sphi 0, %s137
    %s141 = sphi 0, %s140
    %s157 = sphi 0, %s141
  $region4: #{tpu_custom_call.1} parent=0 // loop_header_branch
    %14 = sbr.rel (%p12) target = $region8
  $region5: #{tpu_custom_call.1} parent=0 // loop_body
    %s16 = ssub.s32 %s11, 1
    %s17 = ssub.s32 %s11, 2
    %s24 = sadd.s32 1, %s19
    %p25 = scmp.ge.s32.totalorder %s24, 2
    %s26 = scalar_select %p25, 0, %s24
    %s27 = sadd.s32 1, %s18
    %s28 = scalar_select %p25, %s27, %s18
    %p29 = scmp.ge.s32.totalorder %s28, 2
    %s30 = scalar_select %p29, 0, %s28
    %s31 = ssub.s32 %s18, %s30
    %p32 = scmp.eq.s32.totalorder %s31, 0
    %s34 = sadd.s32 %s33, 1
    %s35 = scalar_select %p32, %s33, %s34
    %p38 = pneg %p32
    %p39 = scmp.eq.s32.totalorder %s11, 3
    %p40 = por %p38, %p39
    %p41 = scmp.ne.s32.totalorder %s33, %s36
    %p42 = scmp.eq.s32.totalorder %s11, 0
    %p43 = por %p41, %p42
    %p44 = scmp.ne.s32.totalorder %s33, %s36
    %p45 = scmp.eq.s32.totalorder %s16, 3
    %p46 = por %p44, %p45
    %p47 = scmp.ne.s32.totalorder %s36, %s37
    %p48 = scmp.eq.s32.totalorder %s16, 0
    %p49 = por %p47, %p48
    %p50 = scmp.ne.s32.totalorder %s36, %s37
    %p51 = scmp.eq.s32.totalorder %s17, 3
    %p52 = por %p50, %p51
    %p54 = scmp.ne.s32.totalorder %s37, %s53
    %p55 = scmp.eq.s32.totalorder %s17, 0
    %p56 = por %p54, %p55
    %s57 = ssub.s32 %s19, %s26
    %p58 = scmp.eq.s32.totalorder %s57, 0
    %s60 = sadd.s32 %s59, 1
    %s61 = scalar_select %p58, %s59, %s60
    %p64 = pneg %p58
    %p65 = scmp.eq.s32.totalorder %s11, 3
    %p66 = por %p64, %p65
    %p67 = scmp.ne.s32.totalorder %s59, %s62
    %p68 = scmp.eq.s32.totalorder %s11, 0
    %p69 = por %p67, %p68
    %p70 = scmp.ne.s32.totalorder %s59, %s62
    %p71 = scmp.eq.s32.totalorder %s16, 3
    %p72 = por %p70, %p71
    %p73 = scmp.ne.s32.totalorder %s62, %s63
    %p74 = scmp.eq.s32.totalorder %s16, 0
    %p75 = por %p73, %p74
    %p76 = scmp.ne.s32.totalorder %s62, %s63
    %p77 = scmp.eq.s32.totalorder %s17, 3
    %p78 = por %p76, %p77
    %p80 = scmp.ne.s32.totalorder %s63, %s79
    %p81 = scmp.eq.s32.totalorder %s17, 0
    %p82 = por %p80, %p81
    %s83 = ssub.s32 %s18, %s30
    %p84 = scmp.eq.s32.totalorder %s83, 0
    %s86 = sadd.s32 %s85, 1
    %s87 = scalar_select %p84, %s85, %s86
    %p90 = pneg %p84
    %p91 = scmp.eq.s32.totalorder %s11, 3
    %p92 = por %p90, %p91
    %p93 = scmp.ne.s32.totalorder %s85, %s88
    %p94 = scmp.eq.s32.totalorder %s11, 0
    %p95 = por %p93, %p94
    %p96 = scmp.ne.s32.totalorder %s85, %s88
    %p97 = scmp.eq.s32.totalorder %s16, 3
    %p98 = por %p96, %p97
    %p99 = scmp.ne.s32.totalorder %s88, %s89
    %p100 = scmp.eq.s32.totalorder %s16, 0
    %p101 = por %p99, %p100
    %p102 = scmp.ne.s32.totalorder %s88, %s89
    %p103 = scmp.eq.s32.totalorder %s17, 3
    %p104 = por %p102, %p103
    %p106 = scmp.ne.s32.totalorder %s89, %s105
    %p107 = scmp.eq.s32.totalorder %s17, 0
    %p108 = por %p106, %p107
    %s109 = ssub.s32 %s18, %s30
    %p110 = scmp.eq.s32.totalorder %s109, 0
    %s112 = sadd.s32 %s111, 1
    %s113 = scalar_select %p110, %s111, %s112
    %p116 = pneg %p110
    %p117 = scmp.eq.s32.totalorder %s11, 3
    %p118 = por %p116, %p117
    %p119 = scmp.ne.s32.totalorder %s111, %s114
    %p120 = scmp.eq.s32.totalorder %s11, 0
    %p121 = por %p119, %p120
    %p122 = scmp.ne.s32.totalorder %s111, %s114
    %p123 = scmp.eq.s32.totalorder %s16, 3
    %p124 = por %p122, %p123
    %p125 = scmp.ne.s32.totalorder %s114, %s115
    %p126 = scmp.eq.s32.totalorder %s16, 0
    %p127 = por %p125, %p126
    %p128 = scmp.ne.s32.totalorder %s114, %s115
    %p129 = scmp.eq.s32.totalorder %s17, 3
    %p130 = por %p128, %p129
    %p132 = scmp.ne.s32.totalorder %s115, %s131
    %p133 = scmp.eq.s32.totalorder %s17, 0
    %p134 = por %p132, %p133
    %s135 = ssub.s32 %s18, %s30
    %p136 = scmp.eq.s32.totalorder %s135, 0
    %s138 = sadd.s32 %s137, 1
    %s139 = scalar_select %p136, %s137, %s138
    %p142 = pneg %p136
    %p143 = scmp.eq.s32.totalorder %s11, 3
    %p144 = por %p142, %p143
    %p145 = scmp.ne.s32.totalorder %s137, %s140
    %p146 = scmp.eq.s32.totalorder %s11, 0
    %p147 = por %p145, %p146
    %p148 = scmp.ne.s32.totalorder %s137, %s140
    %p149 = scmp.eq.s32.totalorder %s16, 3
    %p150 = por %p148, %p149
    %p151 = scmp.ne.s32.totalorder %s140, %s141
    %p152 = scmp.eq.s32.totalorder %s16, 0
    %p153 = por %p151, %p152
    %p154 = scmp.ne.s32.totalorder %s140, %s141
    %p155 = scmp.eq.s32.totalorder %s17, 3
    %p156 = por %p154, %p155
    %p158 = scmp.ne.s32.totalorder %s141, %s157
    %p159 = scmp.eq.s32.totalorder %s17, 0
    %p160 = por %p158, %p159
    %p161 = scmp.le.s32.totalorder 1, %s11
    %p162 = scmp.lt.s32.totalorder %s11, 5
    %p163 = pnand %p161, %p162
    %p164 = pneg %p163
    // Predicated region
    $region9: #{tpu_custom_call.1} parent=5 // pred_check
      _
    $region10: #{tpu_custom_call.1} parent=5 // pred_check_branch
      %166 = sbr.rel (%p163) target = $region12
    $region11: #{tpu_custom_call.1} parent=5 // pred_region
      %s167 = ssub.s32 %s11, 1
    $region12: #{tpu_custom_call.1} parent=5 // pred_fallthru
      _
    %p168 = scmp.lt.s32.totalorder %s11, 4
    // Predicated region
    $region13: #{tpu_custom_call.1} parent=5 // pred_check
      %p169 = pneg %p168
    $region14: #{tpu_custom_call.1} parent=5 // pred_check_branch
      %171 = sbr.rel (%p169) target = $region16
    $region15: #{tpu_custom_call.1} parent=5 // pred_region
      // Predicated region
      $region17: #{tpu_custom_call.1} parent=15 // pred_check
        %p172 = pneg %p43
      $region18: #{tpu_custom_call.1} parent=15 // pred_check_branch
        %174 = sbr.rel (%p172) target = $region20
      $region19: #{tpu_custom_call.1} parent=15 // pred_region
        %p175 = scmp.lt.s32.totalorder %s18, 1
        %s176 = scalar_select %p175, %s18, 1
        %s177 = smul.addr %s176, 8
        %s178 = scalar_lea.vmem %s0, %s177
      $region20: #{tpu_custom_call.1} parent=15 // pred_fallthru
        _
      // Predicated region
      $region21: #{tpu_custom_call.1} parent=15 // pred_check
        %p179 = pneg %p69
      $region22: #{tpu_custom_call.1} parent=15 // pred_check_branch
        %181 = sbr.rel (%p179) target = $region24
      $region23: #{tpu_custom_call.1} parent=15 // pred_region
        %p182 = scmp.lt.s32.totalorder %s19, 1
        %s183 = scalar_select %p182, %s19, 1
        %s184 = scalar_lea.vmem %s1, %s183
      $region24: #{tpu_custom_call.1} parent=15 // pred_fallthru
        _
      // Predicated region
      $region25: #{tpu_custom_call.1} parent=15 // pred_check
        %p185 = pneg %p95
      $region26: #{tpu_custom_call.1} parent=15 // pred_check_branch
        %187 = sbr.rel (%p185) target = $region28
      $region27: #{tpu_custom_call.1} parent=15 // pred_region
        %p188 = scmp.lt.s32.totalorder %s18, 1
        %s189 = scalar_select %p188, %s18, 1
        %s190 = smul.addr %s189, 8
        %s191 = scalar_lea.vmem %s2, %s190
      $region28: #{tpu_custom_call.1} parent=15 // pred_fallthru
        _
    $region16: #{tpu_custom_call.1} parent=5 // pred_fallthru
      _
    %p192 = scmp.le.s32.totalorder 1, %s11
    %p193 = scmp.lt.s32.totalorder %s11, 5
    %p194 = pnand %p192, %p193
    %p195 = pneg %p194
    // Predicated region
    $region29: #{tpu_custom_call.1} parent=5 // pred_check
      _
    $region30: #{tpu_custom_call.1} parent=5 // pred_check_branch
      %197 = sbr.rel (%p194) target = $region32
    $region31: #{tpu_custom_call.1} parent=5 // pred_region
      %s198 = ssub.s32 %s11, 1
      %p199 = scmp.lt.s32.totalorder %s20, 1
      %s200 = scalar_select %p199, %s20, 1
      %s201 = smul.addr %s200, 8
      %s202 = scalar_lea.vmem %s0, %s201
      %p203 = pneg %p49
      %p204 = pneg %p46
      %p205 = scmp.lt.s32.totalorder %s21, 1
      %s206 = scalar_select %p205, %s21, 1
      %s207 = scalar_lea.vmem %s1, %s206
      %p208 = pneg %p75
      %p209 = pneg %p72
      %p210 = scmp.lt.s32.totalorder %s20, 1
      %s211 = scalar_select %p210, %s20, 1
      %s212 = smul.addr %s211, 8
      %s213 = scalar_lea.vmem %s2, %s212
      %p214 = pneg %p101
      %p215 = pneg %p98
      %p216 = pneg %p127
      %p217 = pneg %p124
      %p218 = scmp.lt.s32.totalorder %s20, 1
      %s219 = scalar_select %p218, %s20, 1
      %s220 = smul.addr %s219, 8
      %s221 = scalar_lea.vmem %s3, %s220
      %p222 = pneg %p153
      %p223 = pneg %p150
      %p224 = scmp.lt.s32.totalorder %s20, 1
      %s225 = scalar_select %p224, %s20, 1
      %s226 = smul.addr %s225, 8
      %s227 = scalar_lea.vmem %s4, %s226
      %p228 = scmp.lt.s32.totalorder %s20, 1
      %s229 = scalar_select %p228, %s20, 1
      %s230 = smul.addr %s229, 8
      %s231 = scalar_lea.vmem %s0, %s230
      %p232 = scmp.lt.s32.totalorder %s21, 1
      %s233 = scalar_select %p232, %s21, 1
      %s234 = scalar_lea.vmem %s1, %s233
      %p235 = scmp.lt.s32.totalorder %s20, 1
      %s236 = scalar_select %p235, %s20, 1
      %s237 = smul.addr %s236, 8
      %s238 = scalar_lea.vmem %s2, %s237
      %p239 = scmp.lt.s32.totalorder %s20, 1
      %s240 = scalar_select %p239, %s20, 1
      %s241 = smul.addr %s240, 8
      %s242 = scalar_lea.vmem %s3, %s241
      %p243 = scmp.lt.s32.totalorder %s20, 1
      %s244 = scalar_select %p243, %s20, 1
      %s245 = smul.addr %s244, 8
      %s246 = scalar_lea.vmem %s4, %s245
      %p247 = scmp.eq.s32.totalorder %s21, 0
      // Predicated region
      $region33: #{tpu_custom_call.1} parent=31 // pred_check
        %p248 = pneg %p247
      $region34: #{tpu_custom_call.1} parent=31 // pred_check_branch
        %250 = sbr.rel (%p248) target = $region36
      $region35: #{tpu_custom_call.1} parent=31 // pred_region
        %251 = vst [vmem:[#allocation2] sm:$0xff] 0.0
        %252 = vst [vmem:[#allocation3] sm:$0xff] 0.0
      $region36: #{tpu_custom_call.1} parent=31 // pred_fallthru
        _
      %v253 = vld [vmem:[%s238] sm:$0xff]
      %v254 = vld [vmem:[%s231] sm:$0xff]
      %v255 = vsub.f32 1.0, %v254
      %v256 = vld [vmem:[%s234] sm:$0x1]
      %258 = vset.pattern.permute.xlu0 0
      %259 = vperm.xlu0 %258, %v255
      %v260 = vpop.permute.xlu0 %259
      %v263 = vlaneseq
      %v264 = vshrl.u32 %v263, 7
      %v265 = vsub.s32 0, %v264
      %v266 = vrot.slane %v256, %v265
      %v268 = vadd.f32 %v260, %v266
      %v269 = vmax.f32 %v268, 0.0
      %v270 = vmul.f32 %v269, %v269
      %272 = vset.pattern.permute.xlu0 0
      %273 = vperm.xlu0 %272, %v253
      %v274 = vpop.permute.xlu0 %273
      %vm276 = vcmp.gt.f32.partialorder %v270, %v274
      %v277 = vld [vmem:[#allocation2] sm:$0xff]
      %v278 = vsel %vm276, %v270, 0.0
      %v279 = vadd.f32 %v277, %v278
      %280 = vst [vmem:[#allocation2] sm:$0xff] %v279
      %v281 = vld [vmem:[#allocation3] sm:$0xff]
      %v282 = vsel %vm276, 1.0, 0.0
      %v283 = vadd.f32 %v281, %v282
      %284 = vst [vmem:[#allocation3] sm:$0xff] %v283
      %p285 = scmp.eq.s32.totalorder %s21, 1
      // Predicated region
      $region37: #{tpu_custom_call.1} parent=31 // pred_check
        %p286 = pneg %p285
      $region38: #{tpu_custom_call.1} parent=31 // pred_check_branch
        %288 = sbr.rel (%p286) target = $region40
      $region39: #{tpu_custom_call.1} parent=31 // pred_region
        %v289 = vld [vmem:[#allocation2] sm:$0xff]
        %290 = vadd.xlane.f32.xlu0 %v289
        %v291 = vpop.xlane.xlu0 %290
        %v292 = vld [vmem:[#allocation3] sm:$0xff]
        %293 = vadd.xlane.f32.xlu0 %v292
        %v294 = vpop.xlane.xlu0 %293
        %vm295 = vcmp.lt.f32.partialorder %v253, 0.0
        %v296 = vsel %vm295, 56.0, 0.0
        %v297 = vsub.f32 %v294, %v296
        %vm298 = vcmask 7168
        %299 = vst.msk [vmem:[%s242] sm:$0xff] %vm298, %v291
        %v300 = vsub.f32 1.0, %v297
        %v301 = vmul.f32 %v300, 0.083333336
        %v302 = vsub.f32 %v253, %v301
        %303 = vst.msk [vmem:[%s246] sm:$0xff] %vm298, %v302
      $region40: #{tpu_custom_call.1} parent=31 // pred_fallthru
        _
      %p304 = scmp.lt.s32.totalorder %s20, 1
      %s305 = scalar_select %p304, %s20, 1
      %s306 = smul.addr %s305, 8
      %s307 = scalar_lea.vmem %s3, %s306
      %p308 = scmp.lt.s32.totalorder %s20, 1
      %s309 = scalar_select %p308, %s20, 1
      %s310 = smul.addr %s309, 8
      %s311 = scalar_lea.vmem %s4, %s310
      // Predicated region
      $region41: #{tpu_custom_call.1} parent=31 // pred_check
        %p312 = pneg %p124
      $region42: #{tpu_custom_call.1} parent=31 // pred_check_branch
        %314 = sbr.rel (%p312) target = $region44
      $region43: #{tpu_custom_call.1} parent=31 // pred_region
        _
      $region44: #{tpu_custom_call.1} parent=31 // pred_fallthru
        _
      // Predicated region
      $region45: #{tpu_custom_call.1} parent=31 // pred_check
        %p315 = pneg %p150
      $region46: #{tpu_custom_call.1} parent=31 // pred_check_branch
        %317 = sbr.rel (%p315) target = $region48
      $region47: #{tpu_custom_call.1} parent=31 // pred_region
        _
      $region48: #{tpu_custom_call.1} parent=31 // pred_fallthru
        _
    $region32: #{tpu_custom_call.1} parent=5 // pred_fallthru
      _
    %p318 = scmp.le.s32.totalorder 2, %s11
    // Predicated region
    $region49: #{tpu_custom_call.1} parent=5 // pred_check
      %p319 = pneg %p318
    $region50: #{tpu_custom_call.1} parent=5 // pred_check_branch
      %321 = sbr.rel (%p319) target = $region52
    $region51: #{tpu_custom_call.1} parent=5 // pred_region
      %s322 = ssub.s32 %s11, 2
      // Predicated region
      $region53: #{tpu_custom_call.1} parent=51 // pred_check
        %p323 = pneg %p130
      $region54: #{tpu_custom_call.1} parent=51 // pred_check_branch
        %325 = sbr.rel (%p323) target = $region56
      $region55: #{tpu_custom_call.1} parent=51 // pred_region
        %p326 = scmp.lt.s32.totalorder %s22, 1
        %s327 = scalar_select %p326, %s22, 1
        %s328 = smul.addr %s327, 8
        %s329 = scalar_lea.vmem %s3, %s328
      $region56: #{tpu_custom_call.1} parent=51 // pred_fallthru
        _
      // Predicated region
      $region57: #{tpu_custom_call.1} parent=51 // pred_check
        %p330 = pneg %p156
      $region58: #{tpu_custom_call.1} parent=51 // pred_check_branch
        %332 = sbr.rel (%p330) target = $region60
      $region59: #{tpu_custom_call.1} parent=51 // pred_region
        %p333 = scmp.lt.s32.totalorder %s22, 1
        %s334 = scalar_select %p333, %s22, 1
        %s335 = smul.addr %s334, 8
        %s336 = scalar_lea.vmem %s4, %s335
      $region60: #{tpu_custom_call.1} parent=51 // pred_fallthru
        _
    $region52: #{tpu_custom_call.1} parent=5 // pred_fallthru
      _
  $region6: #{tpu_custom_call.1} parent=0 // loop_footer
    %s15 = sadd.s32 1, %s11
  $region7: #{tpu_custom_call.1} parent=0 // loop_footer_branch
    %10 = sbr.rel target = $region3
  $region8: #{tpu_custom_call.1} parent=0 // loop_exit
    _

</llo_original>
